<compile_context>
chip_gen: v7x
topology: tpu7x:2x2x1
jax: 0.10.0
libtpu: 0.0.40
codegen_flags: <defaults>
</compile_context>

<pallas_src>
import functools

import jax
import jax.numpy as jnp
from jax import lax
from jax.experimental import pallas as pl
from jax.experimental.pallas import tpu as pltpu


_W = 3 * 128  # lane width of one kernel row: 128 complete (x, y, z) points


def _contraction_kernel(x_ref, o_ref):
    """Contract one (R, 384) tile of the flat AoS position stream.

    Documented invariant (per review): all math is strictly per-row/per-point —
    rolls wrap *within* a row and everything else is elementwise.  The last grid
    block may therefore read out-of-bounds rows (arbitrary/stale VMEM) and its
    out-of-bounds writes are dropped; garbage never contaminates in-bounds rows.
    Do not add cross-row/cross-point reductions without revisiting this.
    """
    x = x_ref[...].astype(jnp.float32)
    w = x.shape[-1]  # static, == _W (multiple of 3, so rows hold whole points)

    a = x * x
    # s3[j] = a[j] + a[j-1] + a[j-2]  ->  ||p||^2 at the point's z-lane (j % 3 == 2).
    s3 = a + pltpu.roll(a, 1, 1) + pltpu.roll(a, 2, 1)
    # Broadcast ||p||^2 from the z-lane back to the x- and y-lanes of the same point.
    b1 = pltpu.roll(s3, w - 1, 1)  # s3[j+1]  -> correct value for lanes with j % 3 == 1
    b2 = pltpu.roll(s3, w - 2, 1)  # s3[j+2]  -> correct value for lanes with j % 3 == 0
    comp = lax.broadcasted_iota(jnp.int32, x.shape, 1) % 3
    mag2 = jnp.where(comp == 2, s3, jnp.where(comp == 1, b1, b2))

    # f(x) = x * s  with  s = 1 if ||x|| < 1 else (2 - 1/||x||) / ||x||.
    # One EUP rsqrt replaces sqrt + two divides; max() keeps the dead branch finite
    # (rsqrt differs from the sqrt+divide reference by a couple ULPs only).
    inv_mag = lax.rsqrt(jnp.maximum(mag2, 1.0))
    scale = jnp.where(mag2 < 1.0, jnp.float32(1.0), (2.0 - inv_mag) * inv_mag)

    o_ref[...] = (x * scale).astype(o_ref.dtype)


@functools.partial(jax.jit, static_argnames=("tile_rows",))
def scene_contraction(positions, tile_rows: int = 4096):
    """MipNeRF-360 scene contraction (order=None / Frobenius norm) via Pallas on TPU."""
    # TODO(synk): only order=None (L2 / sphere of radius 2) is implemented; the
    # optional order=inf (cube) variant of the module is not.
    orig_shape = positions.shape
    assert orig_shape[-1] == 3, "kernel is specialized to 3-D positions"
    assert tile_rows % 8 == 0, "tile_rows must be a multiple of 8"

    flat = positions.reshape(-1)          # free (row-major bitcast), no HBM pass
    e = flat.shape[0]
    e_pad = pl.cdiv(e, _W) * _W
    if e_pad != e:
        # TODO(synk): this pad (and the slice below) costs an extra HBM copy; it only
        # triggers when the point count is not a multiple of 128 (rare for ray batches).
        flat = jnp.pad(flat, (0, e_pad - e))
    m_rows = e_pad // _W
    x2d = flat.reshape(m_rows, _W)        # free (row-major bitcast)

    r = m_rows if m_rows <= tile_rows else tile_rows
    grid = (pl.cdiv(m_rows, r),)          # last block may be partial (see kernel docstring)

    out2d = pl.pallas_call(
        _contraction_kernel,
        out_shape=jax.ShapeDtypeStruct((m_rows, _W), positions.dtype),
        grid_spec=pltpu.PrefetchScalarGridSpec(
            num_scalar_prefetch=0,
            grid=grid,
            in_specs=[pl.BlockSpec((r, _W), lambda i: (i, 0))],
            out_specs=pl.BlockSpec((r, _W), lambda i: (i, 0)),
        ),
        compiler_params=pltpu.CompilerParams(
            # On v7x, confirm both TensorCores are used; if not, use pltpu.CORE_PARALLEL.
            dimension_semantics=("parallel",),
            vmem_limit_bytes=48 * 1024 * 1024,
        ),
    )(x2d)

    out_flat = out2d.reshape(-1)
    if e_pad != e:
        out_flat = out_flat[:e]
    return out_flat.reshape(orig_shape)


def _reference(positions):
    mag = jnp.linalg.norm(positions, axis=-1, keepdims=True)
    return jnp.where(mag < 1, positions, (2 - 1 / mag) * (positions / mag))


if __name__ == "__main__":
    key = jax.random.PRNGKey(0)
    k0, k1, k2 = jax.random.split(key, 3)

    # Primary example: 2 rays x 256 samples x 3-D positions, scaled so some points
    # fall inside the unit ball and some outside.
    positions = jax.random.normal(k0, (2, 256, 3), dtype=jnp.float32) * 3.0
    out = jax.block_until_ready(scene_contraction(positions))
    assert out.shape == positions.shape and out.dtype == positions.dtype
    assert jnp.allclose(out, _reference(positions), atol=1e-5, rtol=1e-5)

    # Multi-block grid with a partial (OOB) last block: 8192 points, 24-row tiles.
    p2 = jax.random.normal(k1, (2, 4096, 3), dtype=jnp.float32) * 2.5
    o2 = jax.block_until_ready(scene_contraction(p2, tile_rows=24))
    assert jnp.allclose(o2, _reference(p2), atol=1e-5, rtol=1e-5)

    # Ragged point count (not a multiple of 128) exercises the padded fallback path.
    p3 = jax.random.normal(k2, (5, 7, 3), dtype=jnp.float32) * 2.0
    o3 = jax.block_until_ready(scene_contraction(p3))
    assert jnp.allclose(o3, _reference(p3), atol=1e-5, rtol=1e-5)

    print("KERNEL_OK")
</pallas_src>

<mosaic_0001>
module attributes {stable_mosaic.version = 11 : i64} {
  func.func @_contraction_kernel(%arg0: i32, %arg1: memref<4x384xf32, #tpu.memory_space<vmem>>, %arg2: memref<4x384xf32, #tpu.memory_space<vmem>>) attributes {dimension_semantics = [#tpu.dimension_semantics<parallel>], iteration_bounds = array<i64: 1>, scalar_prefetch = 0 : i64, scratch_operands = 0 : i64, tpu.core_type = #tpu.core_type<tc>, window_params = [{transform_indices = @transform_0, window_bounds = array<i64: 4, 384>}, {transform_indices = @transform_1, window_bounds = array<i64: 4, 384>}]} {
    %c0 = arith.constant 0 : index
    %c0_0 = arith.constant 0 : index
    %0 = vector.load %arg1[%c0, %c0_0] : memref<4x384xf32, #tpu.memory_space<vmem>>, vector<4x384xf32>
    %1 = arith.mulf %0, %0 : vector<4x384xf32>
    %c1_i32 = arith.constant 1 : i32
    %2 = tpu.dynamic_rotate %1 by %c1_i32 dim 1 : vector<4x384xf32>, i32 -> vector<4x384xf32>
    %3 = arith.addf %1, %2 : vector<4x384xf32>
    %c2_i32 = arith.constant 2 : i32
    %4 = tpu.dynamic_rotate %1 by %c2_i32 dim 1 : vector<4x384xf32>, i32 -> vector<4x384xf32>
    %5 = arith.addf %3, %4 : vector<4x384xf32>
    %c383_i32 = arith.constant 383 : i32
    %6 = tpu.dynamic_rotate %5 by %c383_i32 dim 1 : vector<4x384xf32>, i32 -> vector<4x384xf32>
    %c382_i32 = arith.constant 382 : i32
    %7 = tpu.dynamic_rotate %5 by %c382_i32 dim 1 : vector<4x384xf32>, i32 -> vector<4x384xf32>
    %8 = tpu.iota {dimensions = array<i32: 1>} : vector<4x384xi32>
    %c3_i32 = arith.constant 3 : i32
    %c0_i32 = arith.constant 0 : i32
    %9 = arith.cmpi eq, %c3_i32, %c0_i32 : i32
    %c1_i32_1 = arith.constant 1 : i32
    %10 = arith.select %9, %c1_i32_1, %c3_i32 : i32
    %11 = vector.broadcast %10 : i32 to vector<4x384xi32>
    %12 = arith.remsi %8, %11 : vector<4x384xi32>
    %c0_i32_2 = arith.constant 0 : i32
    %13 = vector.broadcast %c0_i32_2 : i32 to vector<4x384xi32>
    %14 = arith.cmpi ne, %12, %13 : vector<4x384xi32>
    %c0_i32_3 = arith.constant 0 : i32
    %15 = vector.broadcast %c0_i32_3 : i32 to vector<4x384xi32>
    %16 = arith.cmpi slt, %12, %15 : vector<4x384xi32>
    %c0_i32_4 = arith.constant 0 : i32
    %17 = arith.cmpi slt, %10, %c0_i32_4 : i32
    %18 = vector.broadcast %17 : i1 to vector<4x384xi1>
    %19 = vector.broadcast %18 : vector<4x384xi1> to vector<4x384xi1>
    %20 = arith.xori %16, %19 : vector<4x384xi1>
    %21 = arith.andi %20, %14 : vector<4x384xi1>
    %22 = vector.broadcast %10 : i32 to vector<4x384xi32>
    %23 = arith.addi %12, %22 : vector<4x384xi32>
    %24 = arith.select %21, %23, %12 : vector<4x384xi1>, vector<4x384xi32>
    %c2_i32_5 = arith.constant 2 : i32
    %25 = vector.broadcast %c2_i32_5 : i32 to vector<4x384xi32>
    %26 = arith.cmpi eq, %24, %25 : vector<4x384xi32>
    %c1_i32_6 = arith.constant 1 : i32
    %27 = vector.broadcast %c1_i32_6 : i32 to vector<4x384xi32>
    %28 = arith.cmpi eq, %24, %27 : vector<4x384xi32>
    %29 = arith.select %28, %6, %7 : vector<4x384xi1>, vector<4x384xf32>
    %30 = arith.select %26, %5, %29 : vector<4x384xi1>, vector<4x384xf32>
    %cst = arith.constant 1.000000e+00 : f32
    %31 = vector.broadcast %cst : f32 to vector<4x384xf32>
    %32 = arith.maximumf %30, %31 : vector<4x384xf32>
    %33 = math.rsqrt %32 : vector<4x384xf32>
    %cst_7 = arith.constant 1.000000e+00 : f32
    %34 = vector.broadcast %cst_7 : f32 to vector<4x384xf32>
    %35 = arith.cmpf olt, %30, %34 : vector<4x384xf32>
    %cst_8 = arith.constant 2.000000e+00 : f32
    %36 = vector.broadcast %cst_8 : f32 to vector<4x384xf32>
    %37 = arith.subf %36, %33 : vector<4x384xf32>
    %38 = arith.mulf %37, %33 : vector<4x384xf32>
    %cst_9 = arith.constant 1.000000e+00 : f32
    %39 = vector.broadcast %cst_9 : f32 to vector<4x384xf32>
    %40 = arith.select %35, %39, %38 : vector<4x384xi1>, vector<4x384xf32>
    %41 = arith.mulf %0, %40 : vector<4x384xf32>
    %c0_10 = arith.constant 0 : index
    %c0_11 = arith.constant 0 : index
    %42 = vector.load %arg2[%c0_10, %c0_11] : memref<4x384xf32, #tpu.memory_space<vmem>>, vector<4x384xf32>
    tpu.vector_store %arg2[%c0_10, %c0_11], %41 {strides = array<i32>} : memref<4x384xf32, #tpu.memory_space<vmem>>, vector<4x384xf32>,
    return
  }
  func.func @transform_0(%arg0: i32) -> (i32, i32) {
    %c0_i32 = arith.constant 0 : i32
    %c0_i32_0 = arith.constant 0 : i32
    return %arg0, %c0_i32 : i32, i32
  }
  func.func @transform_1(%arg0: i32) -> (i32, i32) {
    %c0_i32 = arith.constant 0 : i32
    %c0_i32_0 = arith.constant 0 : i32
    return %arg0, %c0_i32 : i32, i32
  }
}

</mosaic_0001>

<llo_original>
// kernel: scene_contraction.1
$region0: #{scene_contraction.1}
  #allocation0 [shape = 'u32[]', space=smem, size = 0x4, offset = 0x4, fixed_abs, tag = 'smem constant byte address 0x4 - core index']
  #allocation1 [shape = 'u32[144,128]{1,0:T(1,128)}', space=vmem, size = 0x12000, scoped, tag = 'internal scratch']
  %s0 = inlined_call_operand.vmem [shape: f32[4,384], index: 0, kind: input, shape index: {}]
  %s1 = inlined_call_operand.vmem [shape: f32[4,384], index: 1, kind: output, shape index: {}]
  %s2 = sld [smem:[#allocation0]]
  $region14: #{scene_contraction.1} parent=0
    _
  %s4 = ssub.s32 1, %s2
  %s5 = scalar_select 0, %s4, %s2
  // Predicated region
  $region2: #{scene_contraction.1} parent=0 // pred_check
    _
  $region3: #{scene_contraction.1} parent=0 // pred_check_branch
    %7 = sbr.rel (0) target = $region5
  $region4: #{scene_contraction.1} parent=0 // pred_region
    _
  $region5: #{scene_contraction.1} parent=0 // pred_fallthru
    _
  %v8 = vld [vmem:[%s0] sm:$0xff]
  %v9 = vld [vmem:[%s0 + $0x8] sm:$0xf]
  %v10 = vmul.f32 %v8, %v8
  %v11 = vmul.f32 %v9, %v9
  %v13 = vcombine.high %v10, %v10
  %15 = vrot.lane.b32.xlu0 %v10, 1
  %v16 = vpop.permute.xlu0 %15
  %17 = vrot.lane.b32.xlu0 %v13, 1
  %v18 = vpop.permute.xlu0 %17
  %19 = vrot.lane.b32.xlu0 %v11, 1
  %v20 = vpop.permute.xlu0 %19
  %v21 = vlaneseq
  %v22 = vand.u32 %v21, 127
  %vm23 = vcmp.lt.s32.totalorder %v22, 1
  %v24 = vsel %vm23, %v18, %v20
  %v25 = vsel %vm23, %v16, %v18
  %v26 = vsel %vm23, %v20, %v16
  %v29 = vcombine.low %v26, %v25
  %v31 = vadd.f32 %v10, %v29
  %v32 = vadd.f32 %v11, %v24
  %33 = vrot.lane.b32.xlu0 %v10, 2
  %v34 = vpop.permute.xlu0 %33
  %35 = vrot.lane.b32.xlu0 %v13, 2
  %v36 = vpop.permute.xlu0 %35
  %37 = vrot.lane.b32.xlu0 %v11, 2
  %v38 = vpop.permute.xlu0 %37
  %vm39 = vcmp.lt.s32.totalorder %v22, 2
  %v40 = vsel %vm39, %v36, %v38
  %v41 = vsel %vm39, %v34, %v36
  %v42 = vsel %vm39, %v38, %v34
  %v45 = vcombine.low %v42, %v41
  %v47 = vadd.f32 %v31, %v45
  %v48 = vadd.f32 %v32, %v40
  %v50 = vcombine.high %v47, %v47
  %52 = vrot.lane.b32.xlu0 %v47, 127
  %v53 = vpop.permute.xlu0 %52
  %54 = vrot.lane.b32.xlu0 %v50, 127
  %v55 = vpop.permute.xlu0 %54
  %56 = vrot.lane.b32.xlu0 %v48, 127
  %v57 = vpop.permute.xlu0 %56
  %vm58 = vcmp.lt.s32.totalorder %v22, 127
  %v59 = vsel %vm58, %v55, %v57
  %v60 = vsel %vm58, %v53, %v55
  %v61 = vsel %vm58, %v57, %v53
  %62 = vrot.lane.b32.xlu0 %v47, 126
  %v63 = vpop.permute.xlu0 %62
  %64 = vrot.lane.b32.xlu0 %v50, 126
  %v65 = vpop.permute.xlu0 %64
  %66 = vrot.lane.b32.xlu0 %v48, 126
  %v67 = vpop.permute.xlu0 %66
  %vm68 = vcmp.lt.s32.totalorder %v22, 126
  %v69 = vsel %vm68, %v65, %v67
  %v70 = vsel %vm68, %v63, %v65
  %v71 = vsel %vm68, %v67, %v63
  %v72 = vadd.s32 %v22, 128
  %v73 = vadd.s32 %v22, 256
  %vm74 = vcmp.lt.s32.totalorder %v22, 0
  %v75 = vsub.s32 0, %v22
  %v76 = vsel %vm74, %v75, %v22
  %v77 = vmul.u32.u64.compose %v76, 2863311531
  %v78 = vextract.low.u32 %v77
  %v79 = vextract.high.u32 %v77
  %v80 = vshrl.u32 %v79, 1
  %v81 = vmul.u32 %v80, 3
  %v82 = vsub.s32 %v76, %v81
  %v83 = vsub.s32 0, %v82
  %v84 = vsel %vm74, %v83, %v82
  %vm85 = vcmp.lt.s32.totalorder %v72, 0
  %v86 = vsub.s32 0, %v72
  %v87 = vsel %vm85, %v86, %v72
  %v88 = vmul.u32.u64.compose %v87, 2863311531
  %v89 = vextract.low.u32 %v88
  %v90 = vextract.high.u32 %v88
  %v91 = vshrl.u32 %v90, 1
  %v92 = vmul.u32 %v91, 3
  %v93 = vsub.s32 %v87, %v92
  %v94 = vsub.s32 0, %v93
  %v95 = vsel %vm85, %v94, %v93
  %vm96 = vcmp.lt.s32.totalorder %v73, 0
  %v97 = vsub.s32 0, %v73
  %v98 = vsel %vm96, %v97, %v73
  %v99 = vmul.u32.u64.compose %v98, 2863311531
  %v100 = vextract.low.u32 %v99
  %v101 = vextract.high.u32 %v99
  %v102 = vshrl.u32 %v101, 1
  %v103 = vmul.u32 %v102, 3
  %v104 = vsub.s32 %v98, %v103
  %v105 = vsub.s32 0, %v104
  %v106 = vsel %vm96, %v105, %v104
  %vm107 = vcmp.ne.s32.totalorder %v84, 0
  %vm108 = vcmp.ne.s32.totalorder %v95, 0
  %vm109 = vcmp.ne.s32.totalorder %v106, 0
  %vm110 = vcmp.lt.s32.totalorder %v84, 0
  %vm111 = vcmp.lt.s32.totalorder %v95, 0
  %vm112 = vcmp.lt.s32.totalorder %v106, 0
  %vm113 = vmand %vm110, %vm107
  %vm114 = vmand %vm111, %vm108
  %vm115 = vmand %vm112, %vm109
  %v116 = vadd.s32 %v84, 3
  %v117 = vadd.s32 %v95, 3
  %v118 = vadd.s32 %v106, 3
  %v119 = vsel %vm113, %v116, %v84
  %v120 = vsel %vm114, %v117, %v95
  %v121 = vsel %vm115, %v118, %v106
  %vm122 = vcmp.eq.s32.totalorder %v119, 2
  %vm123 = vcmp.eq.s32.totalorder %v120, 2
  %vm124 = vcmp.eq.s32.totalorder %v121, 2
  %vm125 = vcmp.eq.s32.totalorder %v119, 1
  %vm126 = vcmp.eq.s32.totalorder %v120, 1
  %vm127 = vcmp.eq.s32.totalorder %v121, 1
  %v128 = vsel %vm125, %v60, %v70
  %v129 = vsel %vm126, %v59, %v69
  %v130 = vsel %vm127, %v61, %v71
  %v131 = vsel %vm122, %v47, %v128
  %v132 = vsel %vm123, %v50, %v129
  %v133 = vsel %vm124, %v48, %v130
  %v134 = vmax.f32 %v131, 1.0
  %v135 = vmax.f32 %v132, 1.0
  %v136 = vmax.f32 %v133, 1.0
  %v137 = vrsqrt.pop %v134
  %v138 = vrsqrt.pop %v135
  %v139 = vrsqrt.pop %v136
  %vm140 = vcmp.lt.f32.partialorder %v131, 1.0
  %vm141 = vcmp.lt.f32.partialorder %v132, 1.0
  %vm142 = vcmp.lt.f32.partialorder %v133, 1.0
  %v143 = vsub.f32 2.0, %v137
  %v144 = vsub.f32 2.0, %v138
  %v145 = vsub.f32 2.0, %v139
  %v146 = vmul.f32 %v143, %v137
  %v147 = vmul.f32 %v144, %v138
  %v148 = vmul.f32 %v145, %v139
  %v149 = vsel %vm140, 1.0, %v146
  %v150 = vsel %vm141, 1.0, %v147
  %v151 = vsel %vm142, 1.0, %v148
  %v154 = vcombine.low %v149, %v150
  %v156 = vmul.f32 %v8, %v154
  %v157 = vmul.f32 %v9, %v151
  %158 = vst [vmem:[%s1] sm:$0xff] %v156
  %159 = vst [vmem:[%s1 + $0x8] sm:$0xf] %v157
  // Predicated region
  $region6: #{scene_contraction.1} parent=0 // pred_check
    _
  $region7: #{scene_contraction.1} parent=0 // pred_check_branch
    %161 = sbr.rel (0) target = $region9
  $region8: #{scene_contraction.1} parent=0 // pred_region
    _
  $region9: #{scene_contraction.1} parent=0 // pred_fallthru
    _
  // Predicated region
  $region10: #{scene_contraction.1} parent=0 // pred_check
    _
  $region11: #{scene_contraction.1} parent=0 // pred_check_branch
    %163 = sbr.rel (0) target = $region13
  $region12: #{scene_contraction.1} parent=0 // pred_region
    _
  $region13: #{scene_contraction.1} parent=0 // pred_fallthru
    _

</llo_original>
